<compile_context>
chip_gen: v7x
topology: tpu7x:2x2x1
jax: 0.10.0
libtpu: 0.0.40
codegen_flags: <defaults>
</compile_context>

<pallas_src>
import functools

import jax
import jax.numpy as jnp
import numpy as np
from jax.experimental import pallas as pl
from jax.experimental.pallas import tpu as pltpu

_MIN = 0.0001
_MAX = 10000.0
_SOFTPLUS_THRESHOLD = 20.0  # matches PyTorch F.softplus default threshold

# Candidate lane-dense slab widths, widest first (all multiples of 128).
_COL_CANDIDATES = (2048, 1024, 512, 256, 128)


def _dispact_kernel(x_ref, o_ref, *, compute_dtype):
    """Elementwise clamp(softplus(x), 1e-4, 1e4) on one VMEM block."""
    x = x_ref[...].astype(compute_dtype)
    # PyTorch softplus(beta=1, threshold=20): returns x when x > 20, else
    # log1p(exp(x)). Clamp the exp argument so the discarded branch never
    # overflows (partial last blocks may contain garbage padding; writes there
    # are masked, but keep the math finite anyway).
    safe_x = jnp.minimum(x, _SOFTPLUS_THRESHOLD)
    sp = jnp.where(x > _SOFTPLUS_THRESHOLD, x, jnp.log1p(jnp.exp(safe_x)))
    o_ref[...] = jnp.clip(sp, _MIN, _MAX).astype(o_ref.dtype)


def _pick_block_rows(rows, col, itemsize, pack, target_block_bytes):
    """Choose block rows: packed-tile multiple, >=4 (even) grid steps for big slabs."""
    slab_bytes = rows * col * itemsize
    # Small slabs: one full-extent block (per-step overhead would dominate).
    if rows <= 2 * pack or slab_bytes <= (1 << 20):
        return rows
    # Cap block size at ~target_block_bytes (4 MiB default is already past the
    # measured roofline knee); rounded to the dtype's packed sublane tile.
    max_tr = max(pack, (target_block_bytes // (itemsize * col)) // pack * pack)
    # At least 4 pipeline steps so prologue/epilogue DMA is hidden; even count
    # so v7x's two TCs each get >= 2 blocks and stay balanced.
    nb = max(4, pl.cdiv(rows, max_tr))
    if nb % 2:
        nb += 1
    tr = max(pack, pl.cdiv(pl.cdiv(rows, nb), pack) * pack)
    # Rounding tr up to `pack` can shrink the realized step count; best-effort
    # nudge tr down (staying a pack multiple) until the realized count is even.
    for _ in range(8):
        if tr <= pack or pl.cdiv(rows, tr) % 2 == 0:
            break
        tr -= pack
    if tr >= rows:
        return rows
    return tr


def dispact(x: jax.Array, *, target_block_bytes: int = 4 * 1024 * 1024,
            donate_input: bool = False) -> jax.Array:
    """clamp(softplus(x), 1e-4, 1e4), elementwise, any shape.

    Set donate_input=True only when the caller actually donates `x` (e.g. via
    jax.jit donate_argnums); the output then aliases the input HBM buffer.
    """
    orig_shape = x.shape
    dtype = np.dtype(x.dtype)
    n = x.size
    if n == 0:
        return x
    itemsize = dtype.itemsize

    # bf16: compute natively (bf16 EUP on v6e/v7x keeps the kernel HBM-bound;
    # matches native-bf16 PyTorch semantics). Everything else computes in f32.
    if dtype == np.dtype(jnp.bfloat16):
        compute_dtype = jnp.bfloat16
    else:
        compute_dtype = jnp.float32
    kernel = functools.partial(_dispact_kernel, compute_dtype=compute_dtype)

    # Packed sublane tile rows for this dtype: 8 (f32), 16 (bf16), 32 (int8/fp8).
    pack = max(8, 32 // itemsize)

    compiler_params = pltpu.CompilerParams(
        dimension_semantics=("parallel",),
        # 2 in + 2 out double-buffered ~4 MiB blocks ~= 16 MiB: above v5e's
        # 16 MiB default scoped limit, still comfortable on v7x's 64 MiB VMEM.
        vmem_limit_bytes=32 * 1024 * 1024,
    )
    cost = pl.CostEstimate(
        flops=5 * n,
        transcendentals=2 * n,              # exp + log1p per element
        bytes_accessed=2 * n * itemsize,
    )
    io_alias = {0: 0} if donate_input else {}

    flat = x.reshape(-1)                    # free: contiguous -> contiguous

    # --- Preferred path: lane-dense 2D slab with a *free* reshape ------------
    col = None
    for cand in _COL_CANDIDATES:            # prefer wide slabs with >= 8 rows
        if n % cand == 0 and n // cand >= 8:
            col = cand
            break
    if col is None:
        for cand in _COL_CANDIDATES:        # tiny inputs: any divisor is fine
            if n % cand == 0:
                col = cand
                break

    if col is not None:
        rows = n // col
        slab = flat.reshape(rows, col)      # free: contiguous -> contiguous
        tr = _pick_block_rows(rows, col, itemsize, pack, target_block_bytes)
        num_blocks = pl.cdiv(rows, tr)      # last block may be partial (masked)
        out = pl.pallas_call(
            kernel,
            out_shape=jax.ShapeDtypeStruct((rows, col), dtype),
            grid=(num_blocks,),
            in_specs=[pl.BlockSpec((tr, col), lambda i: (i, 0))],
            out_specs=pl.BlockSpec((tr, col), lambda i: (i, 0)),
            compiler_params=compiler_params,
            cost_estimate=cost,
            input_output_aliases=io_alias,
        )(slab)
        return out.reshape(orig_shape)

    # --- Ragged path (n % 128 != 0, rare): 1-D layout, masked partial tail ---
    # No jnp.pad / output slice, so no extra full-tensor HBM passes.
    LANE = 128
    if n <= 8 * LANE:
        block_elems = n                     # single full-extent block
    else:
        target_elems = max(LANE,
                           (min(target_block_bytes, 512 * 1024) // itemsize)
                           // LANE * LANE)
        nb = max(4, pl.cdiv(n, target_elems))
        if nb % 2:
            nb += 1
        block_elems = max(LANE, pl.cdiv(pl.cdiv(n, nb), LANE) * LANE)
    num_blocks = pl.cdiv(n, block_elems)
    out = pl.pallas_call(
        kernel,
        out_shape=jax.ShapeDtypeStruct((n,), dtype),
        grid=(num_blocks,),
        in_specs=[pl.BlockSpec((block_elems,), lambda i: (i,))],
        out_specs=pl.BlockSpec((block_elems,), lambda i: (i,)),
        compiler_params=compiler_params,
        cost_estimate=cost,
        input_output_aliases=io_alias,
    )(flat)
    return out.reshape(orig_shape)


def _reference(v):
    cd = jnp.bfloat16 if np.dtype(v.dtype) == np.dtype(jnp.bfloat16) else jnp.float32
    vf = v.astype(cd)
    sp = jnp.where(vf > _SOFTPLUS_THRESHOLD, vf,
                   jnp.log1p(jnp.exp(jnp.minimum(vf, _SOFTPLUS_THRESHOLD))))
    return jnp.clip(sp, _MIN, _MAX).astype(v.dtype)


if __name__ == "__main__":
    key = jax.random.PRNGKey(0)
    k1, k2, k3, k4 = jax.random.split(key, 4)
    fn = jax.jit(dispact)

    # (1) Small NCHW f32 input consistent with typical DispAct usage.
    x1 = jax.random.normal(k1, (2, 4, 16, 16), dtype=jnp.float32) * 5.0
    y1 = jax.block_until_ready(fn(x1))
    assert y1.shape == x1.shape and y1.dtype == x1.dtype
    assert jnp.allclose(y1, _reference(x1), rtol=1e-6, atol=1e-6), "mismatch (f32 small)"

    # (2) ~2 MiB f32 input: exercises the >=4-step even "parallel" grid.
    x2 = jax.random.normal(k2, (2, 16, 128, 128), dtype=jnp.float32) * 5.0
    y2 = jax.block_until_ready(fn(x2))
    assert jnp.allclose(y2, _reference(x2), rtol=1e-6, atol=1e-6), "mismatch (f32 multi-block)"

    # (3) bf16 input: native bf16 compute path (packed sublane tile = 16).
    x3 = (jax.random.normal(k3, (4, 16, 32, 32), dtype=jnp.float32) * 5.0).astype(jnp.bfloat16)
    y3 = jax.block_until_ready(fn(x3))
    assert y3.dtype == jnp.bfloat16
    assert jnp.allclose(y3.astype(jnp.float32), _reference(x3).astype(jnp.float32),
                        rtol=2e-2, atol=2e-2), "mismatch (bf16)"

    # (4) Ragged element count (not a multiple of 128): 1-D path, no pad/slice.
    x4 = jax.random.normal(k4, (3, 7, 13), dtype=jnp.float32) * 5.0
    y4 = jax.block_until_ready(fn(x4))
    assert y4.shape == x4.shape
    assert jnp.allclose(y4, _reference(x4), rtol=1e-6, atol=1e-6), "mismatch (ragged)"

    print("KERNEL_OK")
</pallas_src>

<mosaic_0001>
module attributes {stable_mosaic.version = 11 : i64} {
  func.func @_dispact_kernel(%arg0: i32, %arg1: memref<8x256xf32, #tpu.memory_space<vmem>>, %arg2: memref<8x256xf32, #tpu.memory_space<vmem>>) attributes {dimension_semantics = [#tpu.dimension_semantics<parallel>], iteration_bounds = array<i64: 1>, scalar_prefetch = 0 : i64, scratch_operands = 0 : i64, tpu.core_type = #tpu.core_type<tc>, window_params = [{transform_indices = @transform_0, window_bounds = array<i64: 8, 256>}, {transform_indices = @transform_1, window_bounds = array<i64: 8, 256>}]} {
    %c0 = arith.constant 0 : index
    %c0_0 = arith.constant 0 : index
    %0 = vector.load %arg1[%c0, %c0_0] : memref<8x256xf32, #tpu.memory_space<vmem>>, vector<8x256xf32>
    %cst = arith.constant 2.000000e+01 : f32
    %1 = vector.broadcast %cst : f32 to vector<8x256xf32>
    %2 = arith.minimumf %0, %1 : vector<8x256xf32>
    %cst_1 = arith.constant 2.000000e+01 : f32
    %3 = vector.broadcast %cst_1 : f32 to vector<8x256xf32>
    %4 = arith.cmpf ogt, %0, %3 : vector<8x256xf32>
    %5 = math.exp %2 : vector<8x256xf32>
    %6 = math.log1p %5 : vector<8x256xf32>
    %7 = arith.select %4, %0, %6 : vector<8x256xi1>, vector<8x256xf32>
    %cst_2 = arith.constant 9.99999974E-5 : f32
    %cst_3 = arith.constant 1.000000e+04 : f32
    %8 = vector.broadcast %cst_2 : f32 to vector<8x256xf32>
    %9 = arith.maximumf %8, %7 : vector<8x256xf32>
    %10 = vector.broadcast %cst_3 : f32 to vector<8x256xf32>
    %11 = arith.minimumf %10, %9 : vector<8x256xf32>
    %c0_4 = arith.constant 0 : index
    %c0_5 = arith.constant 0 : index
    %12 = vector.load %arg2[%c0_4, %c0_5] : memref<8x256xf32, #tpu.memory_space<vmem>>, vector<8x256xf32>
    tpu.vector_store %arg2[%c0_4, %c0_5], %11 {strides = array<i32>} : memref<8x256xf32, #tpu.memory_space<vmem>>, vector<8x256xf32>,
    return
  }
  func.func @transform_0(%arg0: i32) -> (i32, i32) {
    %c0_i32 = arith.constant 0 : i32
    %c0_i32_0 = arith.constant 0 : i32
    return %arg0, %c0_i32 : i32, i32
  }
  func.func @transform_1(%arg0: i32) -> (i32, i32) {
    %c0_i32 = arith.constant 0 : i32
    %c0_i32_0 = arith.constant 0 : i32
    return %arg0, %c0_i32 : i32, i32
  }
}

</mosaic_0001>

<llo_original>
// kernel: dispact.1
$region0: #{dispact.1}
  #allocation0 [shape = 'u32[]', space=smem, size = 0x4, offset = 0x4, fixed_abs, tag = 'smem constant byte address 0x4 - core index']
  #allocation1 [shape = 'u32[144,128]{1,0:T(1,128)}', space=vmem, size = 0x12000, scoped, tag = 'internal scratch']
  %s0 = inlined_call_operand.vmem [shape: f32[8,256], index: 0, kind: input, shape index: {}]
  %s1 = inlined_call_operand.vmem [shape: f32[8,256], index: 1, kind: output, shape index: {}]
  %s2 = sld [smem:[#allocation0]]
  $region14: #{dispact.1} parent=0
    _
  %s4 = ssub.s32 1, %s2
  %s5 = scalar_select 0, %s4, %s2
  // Predicated region
  $region2: #{dispact.1} parent=0 // pred_check
    _
  $region3: #{dispact.1} parent=0 // pred_check_branch
    %7 = sbr.rel (0) target = $region5
  $region4: #{dispact.1} parent=0 // pred_region
    _
  $region5: #{dispact.1} parent=0 // pred_fallthru
    _
  %v8 = vld [vmem:[%s0] sm:$0xff]
  %v9 = vld [vmem:[%s0 + $0x8] sm:$0xff]
  %v10 = vmin.f32 %v8, 20.0
  %v11 = vmin.f32 %v9, 20.0
  %vm12 = vcmp.gt.f32.partialorder %v8, 20.0
  %vm13 = vcmp.gt.f32.partialorder %v9, 20.0
  %v14 = vmul.f32 %v10, 1.442695
  %v15 = vpow.pop %v14
  %v16 = vmul.f32 %v11, 1.442695
  %v17 = vpow.pop %v16
  %v18 = vadd.f32 %v15, 1.0
  %v19 = vlog2.pop %v18
  %v20 = vmul.f32 %v19, 0.6931472
  %v21 = vmul.f32 -0.5, %v15
  %v22 = vadd.f32 %v21, 1.0
  %v23 = vmul.f32 %v22, %v15
  %v24 = vand.u32 2147483647, %v15
  %vm25 = vcmp.lt.f32.partialorder %v24, 0.0004427343
  %v26 = vsel %vm25, %v23, %v20
  %v27 = vadd.f32 %v17, 1.0
  %v28 = vlog2.pop %v27
  %v29 = vmul.f32 %v28, 0.6931472
  %v30 = vmul.f32 -0.5, %v17
  %v31 = vadd.f32 %v30, 1.0
  %v32 = vmul.f32 %v31, %v17
  %v33 = vand.u32 2147483647, %v17
  %vm34 = vcmp.lt.f32.partialorder %v33, 0.0004427343
  %v35 = vsel %vm34, %v32, %v29
  %v36 = vsel %vm12, %v8, %v26
  %v37 = vsel %vm13, %v9, %v35
  %v38 = vmax.f32 %v36, 0.0001
  %v39 = vmax.f32 %v37, 0.0001
  %v40 = vmin.f32 %v38, 10000.0
  %v41 = vmin.f32 %v39, 10000.0
  %42 = vst [vmem:[%s1] sm:$0xff] %v40
  %43 = vst [vmem:[%s1 + $0x8] sm:$0xff] %v41
  // Predicated region
  $region6: #{dispact.1} parent=0 // pred_check
    _
  $region7: #{dispact.1} parent=0 // pred_check_branch
    %45 = sbr.rel (0) target = $region9
  $region8: #{dispact.1} parent=0 // pred_region
    _
  $region9: #{dispact.1} parent=0 // pred_fallthru
    _
  // Predicated region
  $region10: #{dispact.1} parent=0 // pred_check
    _
  $region11: #{dispact.1} parent=0 // pred_check_branch
    %47 = sbr.rel (0) target = $region13
  $region12: #{dispact.1} parent=0 // pred_region
    _
  $region13: #{dispact.1} parent=0 // pred_fallthru
    _

</llo_original>
